<compile_context>
chip_gen: v6e
topology: v6e:2x2x1
jax: 0.10.0
libtpu: 0.0.40
codegen_flags: <defaults>
</compile_context>

<pallas_src>
import functools

import jax
import jax.numpy as jnp
from jax.experimental import pallas as pl
from jax.experimental.pallas import tpu as pltpu


# --------------------------------------------------------------------------- #
# Kernels
# --------------------------------------------------------------------------- #
def _cs_se_fused_kernel(x_ref, w1_ref, b1_ref, w2_ref, b2_ref, wc_ref, bc_ref,
                        o_ref, *, inv_hw):
    """One batch element per grid step: x block is (1, C, HW)."""
    x = x_ref[0]                                   # (C, HW) native dtype
    xf = x.astype(jnp.float32)                     # single upcast, reused below

    # ---- cSE squeeze: XLU lane reduction (no N=1 MXU matvec, no ones operand)
    sq = jnp.sum(xf, axis=-1, keepdims=True) * inv_hw            # (C, 1) f32
    # fc1 + ReLU, fc2 + sigmoid (tiny MXU dots, f32 accumulation)
    h = jnp.maximum(
        jnp.dot(w1_ref[...], sq.astype(w1_ref.dtype),
                preferred_element_type=jnp.float32) + b1_ref[...], 0.0)
    g = jax.nn.sigmoid(
        jnp.dot(w2_ref[...], h.astype(w2_ref.dtype),
                preferred_element_type=jnp.float32) + b2_ref[...])        # (C, 1)

    # ---- sSE 1x1 conv: VPU multiply + sublane (XLU) reduce over channels ----
    ss = jax.nn.sigmoid(
        jnp.sum(xf * wc_ref[...], axis=0, keepdims=True) + bc_ref[0])     # (1, HW)

    # ---- combine: elementwise max of the two excited tensors (f32 vregs) ----
    o_ref[0] = jnp.maximum(xf * g, xf * ss).astype(o_ref.dtype)


def _channel_gate_kernel(x_ref, w1_ref, b1_ref, w2_ref, b2_ref, g_ref, sum_sc,
                         *, hw, needs_mask):
    """Tiled gate pass: accumulate spatial sums over the HW axis ("arbitrary"),
    then run fc1/fc2/sigmoid on the last step.  x block is (1, C, T)."""
    j = pl.program_id(1)

    @pl.when(j == 0)
    def _():
        sum_sc[...] = jnp.zeros_like(sum_sc)

    x = x_ref[0]                                   # (C, T)
    xf = x.astype(jnp.float32)
    if needs_mask:                                 # masked tail tile (static)
        t = x.shape[1]
        col = jax.lax.broadcasted_iota(jnp.int32, (1, t), 1) + j * t
        xf = jnp.where(col < hw, xf, 0.0)
    sum_sc[...] += jnp.sum(xf, axis=-1, keepdims=True)            # (C, 1)

    @pl.when(j == pl.num_programs(1) - 1)
    def _():
        sq = sum_sc[...] * (1.0 / hw)
        h = jnp.maximum(
            jnp.dot(w1_ref[...], sq.astype(w1_ref.dtype),
                    preferred_element_type=jnp.float32) + b1_ref[...], 0.0)
        g = jax.nn.sigmoid(
            jnp.dot(w2_ref[...], h.astype(w2_ref.dtype),
                    preferred_element_type=jnp.float32) + b2_ref[...])
        g_ref[0] = g.astype(g_ref.dtype)


def _cs_se_excite_kernel(x_ref, g_ref, wc_ref, bc_ref, o_ref):
    """Tiled excite pass: x block (1, C, T); channel gate precomputed."""
    x = x_ref[0]                                   # (C, T)
    xf = x.astype(jnp.float32)
    g = g_ref[0]                                   # (C, 1) f32
    ss = jax.nn.sigmoid(
        jnp.sum(xf * wc_ref[...], axis=0, keepdims=True) + bc_ref[0])     # (1, T)
    o_ref[0] = jnp.maximum(xf * g, xf * ss).astype(o_ref.dtype)


# --------------------------------------------------------------------------- #
# Generation-aware VMEM budgeting
# --------------------------------------------------------------------------- #
@functools.lru_cache(maxsize=None)
def _vmem_caps():
    cap = 128 << 20                               # v5e / v6e default
    try:
        info = pltpu.get_tpu_info()
        cap = int(getattr(info, "vmem_capacity_bytes", cap) or cap)
    except Exception:
        pass
    limit_cap = (cap * 3) // 4                    # 48 MiB on v7x, 96 MiB on v5e/v6e
    fused_budget = limit_cap - (8 << 20)          # headroom for internal scratch
    tile_budget = max(8 << 20, limit_cap // 4)    # ~12 MiB v7x, ~24 MiB v5e/v6e
    return cap, limit_cap, fused_budget, tile_budget


def _pick_hw_tile(hw, c, itemsize, budget):
    """Largest multiple of 128 whose in+out (double-buffered) + f32 temp blocks
    fit the budget; need not divide HW (tail tiles are masked)."""
    hw_pad = -(-hw // 128) * 128
    per_col = (4 * itemsize + (4 if itemsize < 4 else 0)) * c
    t = (budget // max(per_col, 1)) // 128 * 128
    return int(min(hw_pad, max(128, t)))


# --------------------------------------------------------------------------- #
# Wrapper
# --------------------------------------------------------------------------- #
@functools.partial(jax.jit, static_argnames=("reduction_ratio", "force_tiled",
                                             "hw_tile", "donate_x"))
def channel_spatial_se(x, w1, b1, w2, b2, wc, bc, *, reduction_ratio=2,
                       force_tiled=False, hw_tile=None, donate_x=False):
    """x: (B, C, H, W) -> (B, C, H, W).  `reduction_ratio` kept for interface
    parity with the PyTorch module; Cr is taken from w1.shape."""
    del reduction_ratio
    B, C, H, W = x.shape
    HW = H * W
    Cr = w1.shape[0]
    itemsize = jnp.dtype(x.dtype).itemsize
    x2 = x.reshape(B, C, HW)

    # Weights in x.dtype (native bf16 MXU path for bf16 inputs); biases / conv
    # column stay f32 (tiny, added to f32 accumulators).
    w1c = w1.astype(x.dtype)
    w2c = w2.astype(x.dtype)
    b1_2 = b1.reshape(Cr, 1).astype(jnp.float32)
    b2_2 = b2.reshape(C, 1).astype(jnp.float32)
    wc_col = wc.reshape(C, 1).astype(jnp.float32)
    bc_1 = bc.reshape(1).astype(jnp.float32)

    cap, limit_cap, fused_budget, tile_budget = _vmem_caps()

    x_block_bytes = C * HW * itemsize
    upcast_bytes = C * HW * 4 if itemsize < 4 else 0          # f32 temp for bf16 x
    weight_bytes = 2 * (2 * Cr * C * itemsize + (Cr + C) * 4 + C * 4)
    fused_footprint = 4 * x_block_bytes + upcast_bytes + weight_bytes

    # On v7x-class parts with tiny batch and a large feature map, prefer the
    # tiled path so grid=(B, HW//T) feeds both TensorCores and the pipeline.
    prefer_split = (cap <= (64 << 20)) and (B < 8) and (x_block_bytes >= (4 << 20))
    use_tiled = force_tiled or (fused_footprint > fused_budget) or prefer_split

    io_alias = {0: 0} if donate_x else {}
    const2 = lambda shape: pl.BlockSpec(shape, lambda b, j: (0,) * len(shape))

    if not use_tiled:
        # ---- fused single-pass path: one HBM read / one HBM write of x ------
        vmem_limit = int(min(limit_cap, max(32 << 20, fused_footprint + (4 << 20))))
        full = lambda shape: pl.BlockSpec(shape, lambda b: (0,) * len(shape))
        out = pl.pallas_call(
            functools.partial(_cs_se_fused_kernel, inv_hw=1.0 / HW),
            out_shape=jax.ShapeDtypeStruct((B, C, HW), x.dtype),
            grid_spec=pltpu.PrefetchScalarGridSpec(
                num_scalar_prefetch=0,
                grid=(B,),
                in_specs=[
                    pl.BlockSpec((1, C, HW), lambda b: (b, 0, 0)),        # x
                    full((Cr, C)),                                        # fc1 weight
                    full((Cr, 1)),                                        # fc1 bias
                    full((C, Cr)),                                        # fc2 weight
                    full((C, 1)),                                         # fc2 bias
                    full((C, 1)),                                         # conv weight col
                    pl.BlockSpec(memory_space=pltpu.MemorySpace.SMEM),    # conv bias
                ],
                out_specs=pl.BlockSpec((1, C, HW), lambda b: (b, 0, 0)),
            ),
            compiler_params=pltpu.CompilerParams(
                dimension_semantics=("parallel",),
                vmem_limit_bytes=vmem_limit,
            ),
            input_output_aliases=io_alias,
        )(x2, w1c, b1_2, w2c, b2_2, wc_col, bc_1)
        return out.reshape(B, C, H, W)

    # ---- tiled path ---------------------------------------------------------
    tile = hw_tile if hw_tile is not None else _pick_hw_tile(HW, C, itemsize,
                                                             tile_budget)
    if tile != HW and tile % 128 != 0:            # keep the lane constraint
        tile = -(-tile // 128) * 128
    tile = int(tile)
    nt = pl.cdiv(HW, tile)
    needs_mask = (HW % tile) != 0

    # Pass 1: channel gate via an in-kernel spatial reduction (x read once,
    # never materialized in f32 in HBM).
    gate_fp = 2 * C * tile * itemsize + (C * tile * 4 if itemsize < 4 else 0) \
        + weight_bytes + C * 4
    gate_vmem = int(min(limit_cap, max(32 << 20, gate_fp + (4 << 20))))
    gate = pl.pallas_call(
        functools.partial(_channel_gate_kernel, hw=HW, needs_mask=needs_mask),
        out_shape=jax.ShapeDtypeStruct((B, C, 1), jnp.float32),
        grid_spec=pltpu.PrefetchScalarGridSpec(
            num_scalar_prefetch=0,
            grid=(B, nt),
            in_specs=[
                pl.BlockSpec((1, C, tile), lambda b, j: (b, 0, j)),       # x
                const2((Cr, C)),                                          # fc1 weight
                const2((Cr, 1)),                                          # fc1 bias
                const2((C, Cr)),                                          # fc2 weight
                const2((C, 1)),                                           # fc2 bias
            ],
            out_specs=pl.BlockSpec((1, C, 1), lambda b, j: (b, 0, 0)),
            scratch_shapes=[pltpu.VMEM((C, 1), jnp.float32)],
        ),
        compiler_params=pltpu.CompilerParams(
            dimension_semantics=("parallel", "arbitrary"),
            vmem_limit_bytes=gate_vmem,
        ),
    )(x2, w1c, b1_2, w2c, b2_2)

    # Pass 2: spatially tiled excite (sSE + combine), all axes parallel.
    excite_fp = 4 * C * tile * itemsize + (C * tile * 4 if itemsize < 4 else 0) \
        + 4 * C * 4 + 2 * C * 4
    excite_vmem = int(min(limit_cap, max(32 << 20, excite_fp + (4 << 20))))
    out = pl.pallas_call(
        _cs_se_excite_kernel,
        out_shape=jax.ShapeDtypeStruct((B, C, HW), x.dtype),
        grid_spec=pltpu.PrefetchScalarGridSpec(
            num_scalar_prefetch=0,
            grid=(B, nt),
            in_specs=[
                pl.BlockSpec((1, C, tile), lambda b, j: (b, 0, j)),       # x
                pl.BlockSpec((1, C, 1), lambda b, j: (b, 0, 0)),          # channel gate
                const2((C, 1)),                                           # conv weight col
                pl.BlockSpec(memory_space=pltpu.MemorySpace.SMEM),        # conv bias
            ],
            out_specs=pl.BlockSpec((1, C, tile), lambda b, j: (b, 0, j)),
        ),
        compiler_params=pltpu.CompilerParams(
            dimension_semantics=("parallel", "parallel"),
            vmem_limit_bytes=excite_vmem,
        ),
        input_output_aliases=io_alias,
    )(x2, gate, wc_col, bc_1)
    return out.reshape(B, C, H, W)


# --------------------------------------------------------------------------- #
# Reference + test
# --------------------------------------------------------------------------- #
def _reference(x, w1, b1, w2, b2, wc, bc):
    B, C, H, W = x.shape
    sq = x.reshape(B, C, -1).mean(axis=2)                       # (B, C)
    h = jax.nn.relu(sq @ w1.T + b1)                             # (B, Cr)
    g = jax.nn.sigmoid(h @ w2.T + b2)                           # (B, C)
    cse = x * g[:, :, None, None]
    conv = jnp.sum(x * wc.reshape(1, C, 1, 1), axis=1) + bc.reshape(())
    sse = x * jax.nn.sigmoid(conv)[:, None, :, :]
    return jnp.maximum(cse, sse)


if __name__ == "__main__":
    def run_case(B, C, H, W, **kwargs):
        Cr = C // 2
        key = jax.random.PRNGKey(0)
        kx, k1, k2, k3, k4, k5, k6 = jax.random.split(key, 7)
        x = jax.random.normal(kx, (B, C, H, W), dtype=jnp.float32)
        # shapes follow the nn.Module __init__
        w1 = jax.random.normal(k1, (Cr, C), dtype=jnp.float32) * 0.5      # fc1.weight
        b1 = jax.random.normal(k2, (Cr,), dtype=jnp.float32) * 0.1        # fc1.bias
        w2 = jax.random.normal(k3, (C, Cr), dtype=jnp.float32) * 0.5      # fc2.weight
        b2 = jax.random.normal(k4, (C,), dtype=jnp.float32) * 0.1         # fc2.bias
        wc = jax.random.normal(k5, (1, C, 1, 1), dtype=jnp.float32) * 0.5 # conv.weight
        bc = jax.random.normal(k6, (1,), dtype=jnp.float32) * 0.1         # conv.bias

        ref = _reference(x, w1, b1, w2, b2, wc, bc)
        out = channel_spatial_se(x, w1, b1, w2, b2, wc, bc, **kwargs)
        out = jax.block_until_ready(out)
        assert out.shape == (B, C, H, W)
        assert jnp.allclose(out, ref, atol=1e-5, rtol=1e-5), kwargs

    # fused single-pass path (default for small feature maps)
    run_case(2, 4, 16, 16)
    # spatially tiled path (gate reduction kernel + excite kernel), HW % tile == 0
    run_case(2, 4, 16, 16, force_tiled=True, hw_tile=128)
    # spatially tiled path with a masked tail tile (HW = 144 not a multiple of 128)
    run_case(2, 4, 12, 12, force_tiled=True, hw_tile=128)

    print("KERNEL_OK")
</pallas_src>

<mosaic_0001>
module attributes {stable_mosaic.version = 11 : i64} {
  func.func @_cs_se_fused_kernel(%arg0: i32, %arg1: memref<1x4x256xf32, #tpu.memory_space<vmem>>, %arg2: memref<2x4xf32, #tpu.memory_space<vmem>>, %arg3: memref<2x1xf32, #tpu.memory_space<vmem>>, %arg4: memref<4x2xf32, #tpu.memory_space<vmem>>, %arg5: memref<4x1xf32, #tpu.memory_space<vmem>>, %arg6: memref<4x1xf32, #tpu.memory_space<vmem>>, %arg7: memref<1xf32, #tpu.memory_space<smem>>, %arg8: memref<1x4x256xf32, #tpu.memory_space<vmem>>) attributes {dimension_semantics = [#tpu.dimension_semantics<parallel>], iteration_bounds = array<i64: 2>, scalar_prefetch = 0 : i64, scratch_operands = 0 : i64, tpu.core_type = #tpu.core_type<tc>, window_params = [{transform_indices = @transform_0, window_bounds = array<i64: 1, 4, 256>}, {pipeline_mode = #tpu.pipeline_mode<synchronous>, transform_indices = @transform_1, window_bounds = array<i64: 2, 4>}, {pipeline_mode = #tpu.pipeline_mode<synchronous>, transform_indices = @transform_2, window_bounds = array<i64: 2, 1>}, {pipeline_mode = #tpu.pipeline_mode<synchronous>, transform_indices = @transform_3, window_bounds = array<i64: 4, 2>}, {pipeline_mode = #tpu.pipeline_mode<synchronous>, transform_indices = @transform_4, window_bounds = array<i64: 4, 1>}, {pipeline_mode = #tpu.pipeline_mode<synchronous>, transform_indices = @transform_5, window_bounds = array<i64: 4, 1>}, {transform_indices = @transform_6, window_bounds = array<i64: 1>}, {transform_indices = @transform_7, window_bounds = array<i64: 1, 4, 256>}]} {
    %c0 = arith.constant 0 : index
    %c0_0 = arith.constant 0 : index
    %c0_1 = arith.constant 0 : index
    %0 = vector.load %arg1[%c0, %c0_0, %c0_1] : memref<1x4x256xf32, #tpu.memory_space<vmem>>, vector<1x4x256xf32>
    %1 = vector.shape_cast %0 : vector<1x4x256xf32> to vector<4x256xf32>
    %cst = arith.constant dense<0.000000e+00> : vector<4xf32>
    %2 = vector.multi_reduction <add>, %1, %cst [1] : vector<4x256xf32> to vector<4xf32>
    %3 = vector.shape_cast %2 : vector<4xf32> to vector<4x1xf32>
    %cst_2 = arith.constant 3.906250e-03 : f32
    %4 = vector.broadcast %cst_2 : f32 to vector<4x1xf32>
    %5 = arith.mulf %3, %4 : vector<4x1xf32>
    %c0_3 = arith.constant 0 : index
    %c0_4 = arith.constant 0 : index
    %6 = vector.load %arg2[%c0_3, %c0_4] : memref<2x4xf32, #tpu.memory_space<vmem>>, vector<2x4xf32>
    %cst_5 = arith.constant dense<0.000000e+00> : vector<2x1xf32>
    %7 = tpu.matmul %6, %5, %cst_5 {dimension_numbers = #tpu.dot_dimension_numbers<[1], [0], [0], [1], [0, 0, 1, 1], [], []>} : vector<2x4xf32>, vector<4x1xf32>, vector<2x1xf32> -> vector<2x1xf32>
    %c0_6 = arith.constant 0 : index
    %c0_7 = arith.constant 0 : index
    %8 = vector.load %arg3[%c0_6, %c0_7] : memref<2x1xf32, #tpu.memory_space<vmem>>, vector<2x1xf32>
    %9 = arith.addf %7, %8 : vector<2x1xf32>
    %cst_8 = arith.constant 0.000000e+00 : f32
    %10 = vector.broadcast %cst_8 : f32 to vector<2x1xf32>
    %11 = arith.maximumf %9, %10 : vector<2x1xf32>
    %c0_9 = arith.constant 0 : index
    %c0_10 = arith.constant 0 : index
    %12 = vector.load %arg4[%c0_9, %c0_10] : memref<4x2xf32, #tpu.memory_space<vmem>>, vector<4x2xf32>
    %cst_11 = arith.constant dense<0.000000e+00> : vector<4x1xf32>
    %13 = tpu.matmul %12, %11, %cst_11 {dimension_numbers = #tpu.dot_dimension_numbers<[1], [0], [0], [1], [0, 0, 1, 1], [], []>} : vector<4x2xf32>, vector<2x1xf32>, vector<4x1xf32> -> vector<4x1xf32>
    %c0_12 = arith.constant 0 : index
    %c0_13 = arith.constant 0 : index
    %14 = vector.load %arg5[%c0_12, %c0_13] : memref<4x1xf32, #tpu.memory_space<vmem>>, vector<4x1xf32>
    %15 = arith.addf %13, %14 : vector<4x1xf32>
    %16 = arith.negf %15 : vector<4x1xf32>
    %17 = math.exp %16 : vector<4x1xf32>
    %cst_14 = arith.constant 1.000000e+00 : f32
    %18 = vector.broadcast %cst_14 : f32 to vector<4x1xf32>
    %19 = arith.addf %18, %17 : vector<4x1xf32>
    %20 = arith.divf %18, %19 : vector<4x1xf32>
    %c0_15 = arith.constant 0 : index
    %c0_16 = arith.constant 0 : index
    %21 = vector.load %arg6[%c0_15, %c0_16] : memref<4x1xf32, #tpu.memory_space<vmem>>, vector<4x1xf32>
    %22 = vector.broadcast %21 : vector<4x1xf32> to vector<4x256xf32>
    %23 = arith.mulf %1, %22 : vector<4x256xf32>
    %cst_17 = arith.constant dense<0.000000e+00> : vector<256xf32>
    %24 = vector.multi_reduction <add>, %23, %cst_17 [0] : vector<4x256xf32> to vector<256xf32>
    %25 = vector.shape_cast %24 : vector<256xf32> to vector<1x256xf32>
    %c0_18 = arith.constant 0 : index
    %26 = memref.load %arg7[%c0_18] : memref<1xf32, #tpu.memory_space<smem>>
    %27 = vector.broadcast %26 : f32 to vector<1x256xf32>
    %28 = arith.addf %25, %27 : vector<1x256xf32>
    %29 = arith.negf %28 : vector<1x256xf32>
    %30 = math.exp %29 : vector<1x256xf32>
    %cst_19 = arith.constant 1.000000e+00 : f32
    %31 = vector.broadcast %cst_19 : f32 to vector<1x256xf32>
    %32 = arith.addf %31, %30 : vector<1x256xf32>
    %33 = arith.divf %31, %32 : vector<1x256xf32>
    %34 = vector.broadcast %20 : vector<4x1xf32> to vector<4x256xf32>
    %35 = arith.mulf %1, %34 : vector<4x256xf32>
    %36 = vector.broadcast %33 : vector<1x256xf32> to vector<4x256xf32>
    %37 = arith.mulf %1, %36 : vector<4x256xf32>
    %38 = arith.maximumf %35, %37 : vector<4x256xf32>
    %c0_20 = arith.constant 0 : index
    %c0_21 = arith.constant 0 : index
    %c0_22 = arith.constant 0 : index
    %39 = vector.load %arg8[%c0_20, %c0_21, %c0_22] : memref<1x4x256xf32, #tpu.memory_space<vmem>>, vector<1x4x256xf32>
    %40 = vector.shape_cast %39 : vector<1x4x256xf32> to vector<4x256xf32>
    %41 = vector.shape_cast %38 : vector<4x256xf32> to vector<1x4x256xf32>
    tpu.vector_store %arg8[%c0_20, %c0_21, %c0_22], %41 {strides = array<i32>} : memref<1x4x256xf32, #tpu.memory_space<vmem>>, vector<1x4x256xf32>,
    return
  }
  func.func @transform_0(%arg0: i32) -> (i32, i32, i32) {
    %c0_i32 = arith.constant 0 : i32
    %c0_i32_0 = arith.constant 0 : i32
    %c0_i32_1 = arith.constant 0 : i32
    return %arg0, %c0_i32, %c0_i32_0 : i32, i32, i32
  }
  func.func @transform_1(%arg0: i32) -> (i32, i32) {
    %c0_i32 = arith.constant 0 : i32
    %c0_i32_0 = arith.constant 0 : i32
    %c0_i32_1 = arith.constant 0 : i32
    return %c0_i32, %c0_i32_0 : i32, i32
  }
  func.func @transform_2(%arg0: i32) -> (i32, i32) {
    %c0_i32 = arith.constant 0 : i32
    %c0_i32_0 = arith.constant 0 : i32
    %c0_i32_1 = arith.constant 0 : i32
    return %c0_i32, %c0_i32_0 : i32, i32
  }
  func.func @transform_3(%arg0: i32) -> (i32, i32) {
    %c0_i32 = arith.constant 0 : i32
    %c0_i32_0 = arith.constant 0 : i32
    %c0_i32_1 = arith.constant 0 : i32
    return %c0_i32, %c0_i32_0 : i32, i32
  }
  func.func @transform_4(%arg0: i32) -> (i32, i32) {
    %c0_i32 = arith.constant 0 : i32
    %c0_i32_0 = arith.constant 0 : i32
    %c0_i32_1 = arith.constant 0 : i32
    return %c0_i32, %c0_i32_0 : i32, i32
  }
  func.func @transform_5(%arg0: i32) -> (i32, i32) {
    %c0_i32 = arith.constant 0 : i32
    %c0_i32_0 = arith.constant 0 : i32
    %c0_i32_1 = arith.constant 0 : i32
    return %c0_i32, %c0_i32_0 : i32, i32
  }
  func.func @transform_6(%arg0: i32) -> i32 {
    %c0_i32 = arith.constant 0 : i32
    %c0_i32_0 = arith.constant 0 : i32
    return %c0_i32 : i32
  }
  func.func @transform_7(%arg0: i32) -> (i32, i32, i32) {
    %c0_i32 = arith.constant 0 : i32
    %c0_i32_0 = arith.constant 0 : i32
    %c0_i32_1 = arith.constant 0 : i32
    return %arg0, %c0_i32, %c0_i32_0 : i32, i32, i32
  }
}

</mosaic_0001>

<llo_original>
// kernel: channel_spatial_se.1
$region0: #{channel_spatial_se.1}
  #allocation0 [shape = 'u32[]', space=smem, size = 0x4, offset = 0x4, fixed_abs, tag = 'smem constant byte address 0x4 - core index']
  #allocation1 [shape = 'u32[144,128]{1,0:T(1,128)}', space=vmem, size = 0x12000, scoped, tag = 'internal scratch']
  #allocation2 [shape = 'f32[1]{0:T(128)S(6)}', space=smem, size = 0x200, scoped, tag = 'scoped memory for channel_spatial_se.1']
  %s0 = inlined_call_operand.vmem [shape: f32[2,4,256], index: 0, kind: input, shape index: {}]
  %s1 = inlined_call_operand.vmem [shape: f32[2,4], index: 1, kind: input, shape index: {}]
  %s2 = inlined_call_operand.vmem [shape: f32[2,1], index: 2, kind: input, shape index: {}]
  %s3 = inlined_call_operand.vmem [shape: f32[4,2], index: 3, kind: input, shape index: {}]
  %s4 = inlined_call_operand.vmem [shape: f32[4,1], index: 4, kind: input, shape index: {}]
  %s5 = inlined_call_operand.vmem [shape: f32[4,1], index: 5, kind: input, shape index: {}]
  %s6 = inlined_call_operand.<no memory space> [shape: f32[1], index: 6, kind: input, shape index: {}]
  %s7 = inlined_call_operand.vmem [shape: f32[2,4,256], index: 7, kind: output, shape index: {}]
  %s8 = sld [smem:[#allocation0]]
  $region61: #{channel_spatial_se.1} parent=0
    _
  %s10 = ssub.s32 1, %s8
  %s11 = scalar_select 0, %s10, %s8
  %12 = sst [smem:[#allocation2]] %s6
  loop: start=0, step=1, limit=4
  $region2: #{channel_spatial_se.1} parent=0 // loop_pre_header
    _
  $region3: #{channel_spatial_se.1} parent=0 // loop_header
    %s14 = sphi 0, %s18
    %p15 = scmp.ge.s32.totalorder %s14, 4
    %s24 = sphi 0, %s26
    %s27 = sphi 0, %s24
    %s28 = sphi 0, %s27
    %s44 = sphi 0, %s28
    %s48 = sphi 0, %s48
    %s50 = sphi 0, %s48
    %s51 = sphi 0, %s50
    %s65 = sphi 0, %s51
    %s69 = sphi 0, %s69
    %s71 = sphi 0, %s69
    %s72 = sphi 0, %s71
    %s86 = sphi 0, %s72
    %s90 = sphi 0, %s90
    %s92 = sphi 0, %s90
    %s93 = sphi 0, %s92
    %s107 = sphi 0, %s93
    %s111 = sphi 0, %s111
    %s113 = sphi 0, %s111
    %s114 = sphi 0, %s113
    %s128 = sphi 0, %s114
    %s132 = sphi 0, %s132
    %s134 = sphi 0, %s132
    %s135 = sphi 0, %s134
    %s149 = sphi 0, %s135
    %s153 = sphi 0, %s153
    %s155 = sphi 0, %s153
    %s156 = sphi 0, %s155
    %s170 = sphi 0, %s156
    %s176 = sphi 0, %s178
    %s179 = sphi 0, %s176
    %s180 = sphi 0, %s179
    %s196 = sphi 0, %s180
  $region4: #{channel_spatial_se.1} parent=0 // loop_header_branch
    %17 = sbr.rel (%p15) target = $region8
  $region5: #{channel_spatial_se.1} parent=0 // loop_body
    %s19 = ssub.s32 %s14, 1
    %s20 = ssub.s32 %s14, 2
    %s21 = sadd.s32 %s14, 1
    %s22 = ssub.s32 %s14, %s21
    %p23 = scmp.eq.s32.totalorder %s22, 0
    %s25 = sadd.s32 %s24, 1
    %s26 = scalar_select %p23, %s24, %s25
    %p29 = pneg %p23
    %p30 = scmp.eq.s32.totalorder %s14, 1
    %p31 = por %p29, %p30
    %p32 = scmp.ne.s32.totalorder %s24, %s27
    %p33 = scmp.eq.s32.totalorder %s14, 0
    %p34 = por %p32, %p33
    %p35 = scmp.ne.s32.totalorder %s24, %s27
    %p36 = scmp.eq.s32.totalorder %s19, 1
    %p37 = por %p35, %p36
    %p38 = scmp.ne.s32.totalorder %s27, %s28
    %p39 = scmp.eq.s32.totalorder %s19, 0
    %p40 = por %p38, %p39
    %p41 = scmp.ne.s32.totalorder %s27, %s28
    %p42 = scmp.eq.s32.totalorder %s20, 1
    %p43 = por %p41, %p42
    %p45 = scmp.ne.s32.totalorder %s28, %s44
    %p46 = scmp.eq.s32.totalorder %s20, 0
    %p47 = por %p45, %p46
    %s49 = sadd.s32 %s48, 1
    %p52 = scmp.eq.s32.totalorder %s14, 1
    %p53 = scmp.ne.s32.totalorder %s48, %s50
    %p54 = scmp.eq.s32.totalorder %s14, 0
    %p55 = por %p53, %p54
    %p56 = scmp.ne.s32.totalorder %s48, %s50
    %p57 = scmp.eq.s32.totalorder %s19, 1
    %p58 = por %p56, %p57
    %p59 = scmp.ne.s32.totalorder %s50, %s51
    %p60 = scmp.eq.s32.totalorder %s19, 0
    %p61 = por %p59, %p60
    %p62 = scmp.ne.s32.totalorder %s50, %s51
    %p63 = scmp.eq.s32.totalorder %s20, 1
    %p64 = por %p62, %p63
    %p66 = scmp.ne.s32.totalorder %s51, %s65
    %p67 = scmp.eq.s32.totalorder %s20, 0
    %p68 = por %p66, %p67
    %s70 = sadd.s32 %s69, 1
    %p73 = scmp.eq.s32.totalorder %s14, 1
    %p74 = scmp.ne.s32.totalorder %s69, %s71
    %p75 = scmp.eq.s32.totalorder %s14, 0
    %p76 = por %p74, %p75
    %p77 = scmp.ne.s32.totalorder %s69, %s71
    %p78 = scmp.eq.s32.totalorder %s19, 1
    %p79 = por %p77, %p78
    %p80 = scmp.ne.s32.totalorder %s71, %s72
    %p81 = scmp.eq.s32.totalorder %s19, 0
    %p82 = por %p80, %p81
    %p83 = scmp.ne.s32.totalorder %s71, %s72
    %p84 = scmp.eq.s32.totalorder %s20, 1
    %p85 = por %p83, %p84
    %p87 = scmp.ne.s32.totalorder %s72, %s86
    %p88 = scmp.eq.s32.totalorder %s20, 0
    %p89 = por %p87, %p88
    %s91 = sadd.s32 %s90, 1
    %p94 = scmp.eq.s32.totalorder %s14, 1
    %p95 = scmp.ne.s32.totalorder %s90, %s92
    %p96 = scmp.eq.s32.totalorder %s14, 0
    %p97 = por %p95, %p96
    %p98 = scmp.ne.s32.totalorder %s90, %s92
    %p99 = scmp.eq.s32.totalorder %s19, 1
    %p100 = por %p98, %p99
    %p101 = scmp.ne.s32.totalorder %s92, %s93
    %p102 = scmp.eq.s32.totalorder %s19, 0
    %p103 = por %p101, %p102
    %p104 = scmp.ne.s32.totalorder %s92, %s93
    %p105 = scmp.eq.s32.totalorder %s20, 1
    %p106 = por %p104, %p105
    %p108 = scmp.ne.s32.totalorder %s93, %s107
    %p109 = scmp.eq.s32.totalorder %s20, 0
    %p110 = por %p108, %p109
    %s112 = sadd.s32 %s111, 1
    %p115 = scmp.eq.s32.totalorder %s14, 1
    %p116 = scmp.ne.s32.totalorder %s111, %s113
    %p117 = scmp.eq.s32.totalorder %s14, 0
    %p118 = por %p116, %p117
    %p119 = scmp.ne.s32.totalorder %s111, %s113
    %p120 = scmp.eq.s32.totalorder %s19, 1
    %p121 = por %p119, %p120
    %p122 = scmp.ne.s32.totalorder %s113, %s114
    %p123 = scmp.eq.s32.totalorder %s19, 0
    %p124 = por %p122, %p123
    %p125 = scmp.ne.s32.totalorder %s113, %s114
    %p126 = scmp.eq.s32.totalorder %s20, 1
    %p127 = por %p125, %p126
    %p129 = scmp.ne.s32.totalorder %s114, %s128
    %p130 = scmp.eq.s32.totalorder %s20, 0
    %p131 = por %p129, %p130
    %s133 = sadd.s32 %s132, 1
    %p136 = scmp.eq.s32.totalorder %s14, 1
    %p137 = scmp.ne.s32.totalorder %s132, %s134
    %p138 = scmp.eq.s32.totalorder %s14, 0
    %p139 = por %p137, %p138
    %p140 = scmp.ne.s32.totalorder %s132, %s134
    %p141 = scmp.eq.s32.totalorder %s19, 1
    %p142 = por %p140, %p141
    %p143 = scmp.ne.s32.totalorder %s134, %s135
    %p144 = scmp.eq.s32.totalorder %s19, 0
    %p145 = por %p143, %p144
    %p146 = scmp.ne.s32.totalorder %s134, %s135
    %p147 = scmp.eq.s32.totalorder %s20, 1
    %p148 = por %p146, %p147
    %p150 = scmp.ne.s32.totalorder %s135, %s149
    %p151 = scmp.eq.s32.totalorder %s20, 0
    %p152 = por %p150, %p151
    %s154 = sadd.s32 %s153, 1
    %p157 = scmp.eq.s32.totalorder %s14, 1
    %p158 = scmp.ne.s32.totalorder %s153, %s155
    %p159 = scmp.eq.s32.totalorder %s14, 0
    %p160 = por %p158, %p159
    %p161 = scmp.ne.s32.totalorder %s153, %s155
    %p162 = scmp.eq.s32.totalorder %s19, 1
    %p163 = por %p161, %p162
    %p164 = scmp.ne.s32.totalorder %s155, %s156
    %p165 = scmp.eq.s32.totalorder %s19, 0
    %p166 = por %p164, %p165
    %p167 = scmp.ne.s32.totalorder %s155, %s156
    %p168 = scmp.eq.s32.totalorder %s20, 1
    %p169 = por %p167, %p168
    %p171 = scmp.ne.s32.totalorder %s156, %s170
    %p172 = scmp.eq.s32.totalorder %s20, 0
    %p173 = por %p171, %p172
    %s174 = ssub.s32 %s14, %s21
    %p175 = scmp.eq.s32.totalorder %s174, 0
    %s177 = sadd.s32 %s176, 1
    %s178 = scalar_select %p175, %s176, %s177
    %p181 = pneg %p175
    %p182 = scmp.eq.s32.totalorder %s14, 1
    %p183 = por %p181, %p182
    %p184 = scmp.ne.s32.totalorder %s176, %s179
    %p185 = scmp.eq.s32.totalorder %s14, 0
    %p186 = por %p184, %p185
    %p187 = scmp.ne.s32.totalorder %s176, %s179
    %p188 = scmp.eq.s32.totalorder %s19, 1
    %p189 = por %p187, %p188
    %p190 = scmp.ne.s32.totalorder %s179, %s180
    %p191 = scmp.eq.s32.totalorder %s19, 0
    %p192 = por %p190, %p191
    %p193 = scmp.ne.s32.totalorder %s179, %s180
    %p194 = scmp.eq.s32.totalorder %s20, 1
    %p195 = por %p193, %p194
    %p197 = scmp.ne.s32.totalorder %s180, %s196
    %p198 = scmp.eq.s32.totalorder %s20, 0
    %p199 = por %p197, %p198
    %p200 = scmp.le.s32.totalorder 1, %s14
    %p201 = scmp.lt.s32.totalorder %s14, 3
    %p202 = pnand %p200, %p201
    %p203 = pneg %p202
    // Predicated region
    $region9: #{channel_spatial_se.1} parent=5 // pred_check
      _
    $region10: #{channel_spatial_se.1} parent=5 // pred_check_branch
      %205 = sbr.rel (%p202) target = $region12
    $region11: #{channel_spatial_se.1} parent=5 // pred_region
      %s206 = ssub.s32 %s14, 1
      // Predicated region
      $region13: #{channel_spatial_se.1} parent=11 // pred_check
        %p207 = pneg %p61
      $region14: #{channel_spatial_se.1} parent=11 // pred_check_branch
        %209 = sbr.rel (%p207) target = $region16
      $region15: #{channel_spatial_se.1} parent=11 // pred_region
        _
      $region16: #{channel_spatial_se.1} parent=11 // pred_fallthru
        _
      // Predicated region
      $region17: #{channel_spatial_se.1} parent=11 // pred_check
        %p210 = pneg %p82
      $region18: #{channel_spatial_se.1} parent=11 // pred_check_branch
        %212 = sbr.rel (%p210) target = $region20
      $region19: #{channel_spatial_se.1} parent=11 // pred_region
        _
      $region20: #{channel_spatial_se.1} parent=11 // pred_fallthru
        _
      // Predicated region
      $region21: #{channel_spatial_se.1} parent=11 // pred_check
        %p213 = pneg %p103
      $region22: #{channel_spatial_se.1} parent=11 // pred_check_branch
        %215 = sbr.rel (%p213) target = $region24
      $region23: #{channel_spatial_se.1} parent=11 // pred_region
        _
      $region24: #{channel_spatial_se.1} parent=11 // pred_fallthru
        _
      // Predicated region
      $region25: #{channel_spatial_se.1} parent=11 // pred_check
        %p216 = pneg %p124
      $region26: #{channel_spatial_se.1} parent=11 // pred_check_branch
        %218 = sbr.rel (%p216) target = $region28
      $region27: #{channel_spatial_se.1} parent=11 // pred_region
        _
      $region28: #{channel_spatial_se.1} parent=11 // pred_fallthru
        _
      // Predicated region
      $region29: #{channel_spatial_se.1} parent=11 // pred_check
        %p219 = pneg %p145
      $region30: #{channel_spatial_se.1} parent=11 // pred_check_branch
        %221 = sbr.rel (%p219) target = $region32
      $region31: #{channel_spatial_se.1} parent=11 // pred_region
        _
      $region32: #{channel_spatial_se.1} parent=11 // pred_fallthru
        _
      // Predicated region
      $region33: #{channel_spatial_se.1} parent=11 // pred_check
        %p222 = pneg %p166
      $region34: #{channel_spatial_se.1} parent=11 // pred_check_branch
        %224 = sbr.rel (%p222) target = $region36
      $region35: #{channel_spatial_se.1} parent=11 // pred_region
        _
      $region36: #{channel_spatial_se.1} parent=11 // pred_fallthru
        _
    $region12: #{channel_spatial_se.1} parent=5 // pred_fallthru
      _
    %p225 = scmp.lt.s32.totalorder %s14, 2
    // Predicated region
    $region37: #{channel_spatial_se.1} parent=5 // pred_check
      %p226 = pneg %p225
    $region38: #{channel_spatial_se.1} parent=5 // pred_check_branch
      %228 = sbr.rel (%p226) target = $region40
    $region39: #{channel_spatial_se.1} parent=5 // pred_region
      // Predicated region
      $region41: #{channel_spatial_se.1} parent=39 // pred_check
        %p229 = pneg %p34
      $region42: #{channel_spatial_se.1} parent=39 // pred_check_branch
        %231 = sbr.rel (%p229) target = $region44
      $region43: #{channel_spatial_se.1} parent=39 // pred_region
        %p232 = scmp.lt.s32.totalorder %s14, 1
        %s233 = scalar_select %p232, %s14, 1
        %s234 = smul.addr %s233, 2
        %s235 = smul.addr %s234, 4
        %s236 = scalar_lea.vmem %s0, %s235
      $region44: #{channel_spatial_se.1} parent=39 // pred_fallthru
        _
    $region40: #{channel_spatial_se.1} parent=5 // pred_fallthru
      _
    %p237 = scmp.le.s32.totalorder 1, %s14
    %p238 = scmp.lt.s32.totalorder %s14, 3
    %p239 = pnand %p237, %p238
    %p240 = pneg %p239
    // Predicated region
    $region45: #{channel_spatial_se.1} parent=5 // pred_check
      _
    $region46: #{channel_spatial_se.1} parent=5 // pred_check_branch
      %242 = sbr.rel (%p239) target = $region48
    $region47: #{channel_spatial_se.1} parent=5 // pred_region
      %s243 = ssub.s32 %s14, 1
      %p244 = scmp.lt.s32.totalorder %s19, 1
      %s245 = scalar_select %p244, %s19, 1
      %s246 = smul.addr %s245, 2
      %s247 = smul.addr %s246, 4
      %s248 = scalar_lea.vmem %s0, %s247
      %p249 = pneg %p40
      %p250 = pneg %p37
      %p251 = pneg %p61
      %p252 = pneg %p58
      %p253 = pneg %p82
      %p254 = pneg %p79
      %p255 = pneg %p103
      %p256 = pneg %p100
      %p257 = pneg %p124
      %p258 = pneg %p121
      %p259 = pneg %p145
      %p260 = pneg %p142
      %p261 = pneg %p166
      %p262 = pneg %p163
      %p263 = pneg %p192
      %p264 = pneg %p189
      %p265 = scmp.lt.s32.totalorder %s19, 1
      %s266 = scalar_select %p265, %s19, 1
      %s267 = smul.addr %s266, 2
      %s268 = smul.addr %s267, 4
      %s269 = scalar_lea.vmem %s7, %s268
      %p270 = scmp.lt.s32.totalorder %s19, 1
      %s271 = scalar_select %p270, %s19, 1
      %s272 = smul.addr %s271, 2
      %s273 = smul.addr %s272, 4
      %s274 = scalar_lea.vmem %s0, %s273
      %p275 = scmp.lt.s32.totalorder %s19, 1
      %s276 = scalar_select %p275, %s19, 1
      %s277 = smul.addr %s276, 2
      %s278 = smul.addr %s277, 4
      %s279 = scalar_lea.vmem %s7, %s278
      %v280 = vld [vmem:[%s274] sm:$0xff]
      %v282 = vcombine.high %v280, %v280
      %vm284 = vcmask 1043456
      %v285 = vsel %vm284, %v280, 0.0
      %v286 = vsel %vm284, %v282, 0.0
      %v287 = vadd.f32 %v285, %v286
      %288 = vadd.xlane.f32.xlu0 %v287
      %v289 = vpop.xlane.xlu0 %288
      %v290 = vmul.f32 %v289, 0.00390625
      %v291 = vld [vmem:[%s1] sm:$0x3]
      %v292 = vld [vmem:[%s2] sm:$0x3]
      %vm293 = vcmask 31744
      %v295 = vsel %vm293, %v291, 0
      %v298 = vsel %vm284, %v290, 0
      %300 = vmatprep.subr.mxu0 0.0
      %301 = vmatpush1.msra.mxu0 0.0
      %302 = vmatprep.subr.mxu0 0.0
      %303 = vmatpush1.msra.mxu0 0.0
      %304 = vmatprep.subr.mxu0 0.0
      %305 = vmatpush1.msra.mxu0 0.0
      %306 = vmatprep.subr.mxu0 0.0
      %307 = vmatpush1.msra.mxu0 0.0
      %308 = vmatprep.subr.mxu0 0.0
      %309 = vmatpush1.msra.mxu0 0.0
      %310 = vmatprep.subr.mxu0 0.0
      %311 = vmatpush1.msra.mxu0 0.0
      %312 = vmatprep.subr.mxu0 0.0
      %313 = vmatpush1.msra.mxu0 0.0
      %314 = vmatprep.subr.mxu0 0.0
      %315 = vmatpush1.msra.mxu0 0.0
      %316 = vmatprep.subr.mxu0 0.0
      %317 = vmatpush1.msra.mxu0 0.0
      %318 = vmatprep.subr.mxu0 0.0
      %319 = vmatpush1.msra.mxu0 0.0
      %320 = vmatprep.subr.mxu0 0.0
      %321 = vmatpush1.msra.mxu0 0.0
      %322 = vmatprep.subr.mxu0 0.0
      %323 = vmatpush1.msra.mxu0 0.0
      %324 = vmatprep.subr.mxu0 0.0
      %325 = vmatpush1.msra.mxu0 0.0
      %326 = vmatprep.subr.mxu0 0.0
      %327 = vmatpush1.msra.mxu0 0.0
      %328 = vmatprep.subr.mxu0 0.0
      %329 = vmatpush1.msra.mxu0 0.0
      %330 = vmatprep.subr.mxu0 0.0
      %331 = vmatpush1.msra.mxu0 %v298
      %332 = vmatprep.subr.mxu0 0.0
      %333 = vmatpush2.msra.mxu0 0.0
      %334 = vmatprep.subr.mxu0 0.0
      %335 = vmatpush2.msra.mxu0 0.0
      %336 = vmatprep.subr.mxu0 0.0
      %337 = vmatpush2.msra.mxu0 0.0
      %338 = vmatprep.subr.mxu0 0.0
      %339 = vmatpush2.msra.mxu0 0.0
      %340 = vmatprep.subr.mxu0 0.0
      %341 = vmatpush2.msra.mxu0 0.0
      %342 = vmatprep.subr.mxu0 0.0
      %343 = vmatpush2.msra.mxu0 0.0
      %344 = vmatprep.subr.mxu0 0.0
      %345 = vmatpush2.msra.mxu0 0.0
      %346 = vmatprep.subr.mxu0 0.0
      %347 = vmatpush2.msra.mxu0 0.0
      %348 = vmatprep.subr.mxu0 0.0
      %349 = vmatpush2.msra.mxu0 0.0
      %350 = vmatprep.subr.mxu0 0.0
      %351 = vmatpush2.msra.mxu0 0.0
      %352 = vmatprep.subr.mxu0 0.0
      %353 = vmatpush2.msra.mxu0 0.0
      %354 = vmatprep.subr.mxu0 0.0
      %355 = vmatpush2.msra.mxu0 0.0
      %356 = vmatprep.subr.mxu0 0.0
      %357 = vmatpush2.msra.mxu0 0.0
      %358 = vmatprep.subr.mxu0 0.0
      %359 = vmatpush2.msra.mxu0 0.0
      %360 = vmatprep.subr.mxu0 0.0
      %361 = vmatpush2.msra.mxu0 0.0
      %362 = vmatprep.subr.mxu0 0.0
      %363 = vmatpush2.msra.mxu0 0.0
      %364 = vmatprep.mubr.f32.mxu0 0.0
      %365 = vmatmul.mubr.f32.gmra.mxu0 %v295
      %v366 = vpop.f32.mrf.mxu0
      %v367 = vadd.f32 %v292, %v366
      %v368 = vpop.f32.mrf.mxu0
      %369 = vdwg.mxu0
      %v370 = vmax.f32 %v367, 0.0
      %v371 = vld [vmem:[%s3] sm:$0xf]
      %v372 = vld [vmem:[%s4] sm:$0xf]
      %vm373 = vcmask 15360
      %v375 = vsel %vm373, %v371, 0
      %vm377 = vcmask 1041408
      %v379 = vsel %vm377, %v370, 0
      %381 = vmatprep.subr.mxu0 0.0
      %382 = vmatpush1.msra.mxu0 0.0
      %383 = vmatprep.subr.mxu0 0.0
      %384 = vmatpush1.msra.mxu0 0.0
      %385 = vmatprep.subr.mxu0 0.0
      %386 = vmatpush1.msra.mxu0 0.0
      %387 = vmatprep.subr.mxu0 0.0
      %388 = vmatpush1.msra.mxu0 0.0
      %389 = vmatprep.subr.mxu0 0.0
      %390 = vmatpush1.msra.mxu0 0.0
      %391 = vmatprep.subr.mxu0 0.0
      %392 = vmatpush1.msra.mxu0 0.0
      %393 = vmatprep.subr.mxu0 0.0
      %394 = vmatpush1.msra.mxu0 0.0
      %395 = vmatprep.subr.mxu0 0.0
      %396 = vmatpush1.msra.mxu0 0.0
      %397 = vmatprep.subr.mxu0 0.0
      %398 = vmatpush1.msra.mxu0 0.0
      %399 = vmatprep.subr.mxu0 0.0
      %400 = vmatpush1.msra.mxu0 0.0
      %401 = vmatprep.subr.mxu0 0.0
      %402 = vmatpush1.msra.mxu0 0.0
      %403 = vmatprep.subr.mxu0 0.0
      %404 = vmatpush1.msra.mxu0 0.0
      %405 = vmatprep.subr.mxu0 0.0
      %406 = vmatpush1.msra.mxu0 0.0
      %407 = vmatprep.subr.mxu0 0.0
      %408 = vmatpush1.msra.mxu0 0.0
      %409 = vmatprep.subr.mxu0 0.0
      %410 = vmatpush1.msra.mxu0 0.0
      %411 = vmatprep.subr.mxu0 0.0
      %412 = vmatpush1.msra.mxu0 %v379
      %413 = vmatprep.subr.mxu0 0.0
      %414 = vmatpush2.msra.mxu0 0.0
      %415 = vmatprep.subr.mxu0 0.0
      %416 = vmatpush2.msra.mxu0 0.0
      %417 = vmatprep.subr.mxu0 0.0
      %418 = vmatpush2.msra.mxu0 0.0
      %419 = vmatprep.subr.mxu0 0.0
      %420 = vmatpush2.msra.mxu0 0.0
      %421 = vmatprep.subr.mxu0 0.0
      %422 = vmatpush2.msra.mxu0 0.0
      %423 = vmatprep.subr.mxu0 0.0
      %424 = vmatpush2.msra.mxu0 0.0
      %425 = vmatprep.subr.mxu0 0.0
      %426 = vmatpush2.msra.mxu0 0.0
      %427 = vmatprep.subr.mxu0 0.0
      %428 = vmatpush2.msra.mxu0 0.0
      %429 = vmatprep.subr.mxu0 0.0
      %430 = vmatpush2.msra.mxu0 0.0
      %431 = vmatprep.subr.mxu0 0.0
      %432 = vmatpush2.msra.mxu0 0.0
      %433 = vmatprep.subr.mxu0 0.0
      %434 = vmatpush2.msra.mxu0 0.0
      %435 = vmatprep.subr.mxu0 0.0
      %436 = vmatpush2.msra.mxu0 0.0
      %437 = vmatprep.subr.mxu0 0.0
      %438 = vmatpush2.msra.mxu0 0.0
      %439 = vmatprep.subr.mxu0 0.0
      %440 = vmatpush2.msra.mxu0 0.0
      %441 = vmatprep.subr.mxu0 0.0
      %442 = vmatpush2.msra.mxu0 0.0
      %443 = vmatprep.subr.mxu0 0.0
      %444 = vmatpush2.msra.mxu0 0.0
      %445 = vmatprep.mubr.f32.mxu0 0.0
      %446 = vmatmul.mubr.f32.gmra.mxu0 %v375
      %v447 = vpop.f32.mrf.mxu0
      %v448 = vadd.f32 %v372, %v447
      %v449 = vpop.f32.mrf.mxu0
      %450 = vdwg.mxu0
      %v451 = vxor.u32 %v448, 2147483648
      %v452 = vmul.f32 %v451, 1.442695
      %v453 = vpow.pop %v452
      %v454 = vadd.f32 %v453, 1.0
      %v455 = vrcp.pop %v454
      %v456 = vmul.f32 1.0, %v455
      %v457 = vld [vmem:[%s5] sm:$0xf]
      %459 = vset.pattern.permute.xlu0 0
      %460 = vperm.xlu0 %459, %v457
      %v461 = vpop.permute.xlu0 %460
      %v463 = vunpack.c.l.s4 839922192
      %v464 = vunpack.c.0.s8 %v463
      %v465 = vlaneseq
      %v466 = vshrl.u32 %v465, 7
      %v467 = vsub.s32 %v464, %v466
      %v468 = vrot.slane %v461, %v467
      %v470 = vmul.f32 %v280, %v468
      %v472 = vcombine.high %v470, %v470
      %v474 = vsel %vm284, %v470, 0.0
      %v475 = vrot.slane %v474, 4
      %v476 = vadd.f32 %v474, %v475
      %v477 = vrot.slane %v476, 2
      %v478 = vadd.f32 %v476, %v477
      %v479 = vrot.slane %v478, 1
      %v480 = vadd.f32 %v478, %v479
      %v481 = vsel %vm284, %v472, 0.0
      %v482 = vrot.slane %v481, 4
      %v483 = vadd.f32 %v481, %v482
      %v484 = vrot.slane %v483, 2
      %v485 = vadd.f32 %v483, %v484
      %v486 = vrot.slane %v485, 1
      %v487 = vadd.f32 %v485, %v486
      %s488 = sld [smem:[#allocation2]]
      %v489 = vstv %s488
      %v490 = vadd.f32 %v480, %v489
      %v491 = vadd.f32 %v487, %v489
      %v492 = vxor.u32 %v490, 2147483648
      %v493 = vxor.u32 %v491, 2147483648
      %v494 = vmul.f32 %v492, 1.442695
      %v495 = vpow.pop %v494
      %v496 = vmul.f32 %v493, 1.442695
      %v497 = vpow.pop %v496
      %v498 = vadd.f32 %v495, 1.0
      %v499 = vadd.f32 %v497, 1.0
      %v500 = vrcp.pop %v498
      %v501 = vmul.f32 1.0, %v500
      %v502 = vrcp.pop %v499
      %v503 = vmul.f32 1.0, %v502
      %505 = vset.pattern.permute.xlu0 0
      %506 = vperm.xlu0 %505, %v456
      %v507 = vpop.permute.xlu0 %506
      %v509 = vunpack.c.l.s4 839922192
      %v510 = vunpack.c.0.s8 %v509
      %v511 = vlaneseq
      %v512 = vshrl.u32 %v511, 7
      %v513 = vsub.s32 %v510, %v512
      %v514 = vrot.slane %v507, %v513
      %v516 = vmul.f32 %v280, %v514
      %v519 = vcombine.low %v501, %v503
      %v521 = vmul.f32 %v280, %v519
      %v522 = vmax.f32 %v516, %v521
      %523 = vst [vmem:[%s279] sm:$0xff] %v522
      %p524 = scmp.lt.s32.totalorder %s19, 1
      %s525 = scalar_select %p524, %s19, 1
      %s526 = smul.addr %s525, 2
      %s527 = smul.addr %s526, 4
      %s528 = scalar_lea.vmem %s7, %s527
      // Predicated region
      $region49: #{channel_spatial_se.1} parent=47 // pred_check
        %p529 = pneg %p189
      $region50: #{channel_spatial_se.1} parent=47 // pred_check_branch
        %531 = sbr.rel (%p529) target = $region52
      $region51: #{channel_spatial_se.1} parent=47 // pred_region
        _
      $region52: #{channel_spatial_se.1} parent=47 // pred_fallthru
        _
    $region48: #{channel_spatial_se.1} parent=5 // pred_fallthru
      _
    %p532 = scmp.le.s32.totalorder 2, %s14
    // Predicated region
    $region53: #{channel_spatial_se.1} parent=5 // pred_check
      %p533 = pneg %p532
    $region54: #{channel_spatial_se.1} parent=5 // pred_check_branch
      %535 = sbr.rel (%p533) target = $region56
    $region55: #{channel_spatial_se.1} parent=5 // pred_region
      %s536 = ssub.s32 %s14, 2
      // Predicated region
      $region57: #{channel_spatial_se.1} parent=55 // pred_check
        %p537 = pneg %p195
      $region58: #{channel_spatial_se.1} parent=55 // pred_check_branch
        %539 = sbr.rel (%p537) target = $region60
      $region59: #{channel_spatial_se.1} parent=55 // pred_region
        %p540 = scmp.lt.s32.totalorder %s20, 1
        %s541 = scalar_select %p540, %s20, 1
        %s542 = smul.addr %s541, 2
        %s543 = smul.addr %s542, 4
        %s544 = scalar_lea.vmem %s7, %s543
      $region60: #{channel_spatial_se.1} parent=55 // pred_fallthru
        _
    $region56: #{channel_spatial_se.1} parent=5 // pred_fallthru
      _
  $region6: #{channel_spatial_se.1} parent=0 // loop_footer
    %s18 = sadd.s32 1, %s14
  $region7: #{channel_spatial_se.1} parent=0 // loop_footer_branch
    %13 = sbr.rel target = $region3
  $region8: #{channel_spatial_se.1} parent=0 // loop_exit
    _

</llo_original>
